<compile_context>
chip_gen: v5e
topology: v5e:2x2
jax: 0.10.0
libtpu: 0.0.40
codegen_flags: <defaults>
</compile_context>

<pallas_src>
import jax
import jax.numpy as jnp
from jax.experimental import pallas as pl
from jax.experimental.pallas import tpu as pltpu

# ---------------- config (small, consistent with the module) ----------------
B = 2       # batch
T = 8       # num_tokens
E = 32      # embedding_size
L = 8       # num_layers
H = 100     # dim (mlp hidden size, fixed default 100 in the module)
TAU = 5.0   # gumbel_sigmoid temperature (hard forward value is tau-invariant)
RANDOM = False
RANDOM_RATIO = 1.0


def block_select_kernel(x_ref, w_ref, b_ref, noise_ref, mask_ref):
    # x_ref:     (B, T*E)  flattened input rows (row-major == torch .view)
    # w_ref:     (T*E, L)  pre-composed weight (w1 folded through w2)
    # b_ref:     (1, L)    effective bias (b1-through-w2 + b2)
    # noise_ref: (B, L)    logistic noise (gumbel1 - gumbel2)
    # mask_ref:  (B, L)    hard gumbel-sigmoid output (0.0 / 1.0)
    logits = (
        jnp.dot(x_ref[...], w_ref[...], preferred_element_type=jnp.float32)
        + b_ref[...]
    )
    # Hard gumbel-sigmoid forward value:
    #   sigmoid((logits + noise) / tau) > 0.5  <=>  logits + noise > 0  (tau>0)
    mask_ref[...] = ((logits + noise_ref[...]) > 0.0).astype(jnp.float32)


def precompose_weights(w1, b1, w2, b2):
    """One-time weight prep (cache across calls): fuse the two Linear layers
    (no nonlinearity between them in the module) into a single (T*E, L)
    matmul weight plus an effective bias."""
    En, Hd = w1.shape            # mlp.weight.T
    THd, Ln = w2.shape           # fc.weight.T
    Tn = THd // Hd
    w2_t = w2.reshape(Tn, Hd, Ln)                     # per-token fc slices
    w_comb = jnp.einsum(
        "eh,thl->tel", w1, w2_t,
        precision=jax.lax.Precision.HIGHEST).reshape(Tn * En, Ln)
    b_eff = (jnp.einsum(
        "h,thl->l", b1, w2_t,
        precision=jax.lax.Precision.HIGHEST) + b2).reshape(1, Ln)
    return w_comb.astype(jnp.float32), b_eff.astype(jnp.float32)


def block_select(x, w_comb, b_eff, noise, *, tau=TAU,
                 random=RANDOM, random_ratio=RANDOM_RATIO, random_key=None):
    # tau kept for interface parity; the hard forward value does not depend
    # on it (pure sign test for tau > 0), so it is folded away.
    del tau
    Bsz, Tn, En = x.shape
    Ln = w_comb.shape[1]
    x_flat = x.reshape(Bsz, Tn * En)   # free contiguous reshape, no transpose

    vmem = pltpu.MemorySpace.VMEM
    mask = pl.pallas_call(
        block_select_kernel,
        out_shape=jax.ShapeDtypeStruct((Bsz, Ln), jnp.float32),
        # No grid: whole problem lives in VMEM, single buffers, one kernel body.
        in_specs=[
            pl.BlockSpec(memory_space=vmem),   # x_flat   (B, T*E)
            pl.BlockSpec(memory_space=vmem),   # w_comb   (T*E, L)
            pl.BlockSpec(memory_space=vmem),   # b_eff    (1, L)
            pl.BlockSpec(memory_space=vmem),   # noise    (B, L)
        ],
        out_specs=pl.BlockSpec(memory_space=vmem),
    )(x_flat, w_comb, b_eff, noise)

    if random:
        # get_random_policy: replace the mask with Bernoulli(random_ratio)
        # samples ('policy * 0.0' only matters for gradients). Glue, not hot path.
        key = random_key if random_key is not None else jax.random.PRNGKey(1234)
        mask = jax.random.bernoulli(key, random_ratio, mask.shape).astype(mask.dtype)

    # TODO(synk): augmented > 0 branch (fc_aug(metrics) concat) and the
    # straight-through gumbel-sigmoid gradient are not implemented (inference
    # forward of the default augmented=0 config only).
    return mask


if __name__ == "__main__":
    key = jax.random.PRNGKey(0)
    kx, kw1, kb1, kw2, kb2, kn = jax.random.split(key, 6)

    # deterministic synthetic parameters (PyTorch-Linear-like uniform init)
    x = jax.random.normal(kx, (B, T, E), dtype=jnp.float32)
    lim1 = 1.0 / (E ** 0.5)
    w1 = jax.random.uniform(kw1, (E, H), jnp.float32, -lim1, lim1)      # mlp.weight.T
    b1 = jax.random.uniform(kb1, (H,), jnp.float32, -lim1, lim1)
    lim2 = 1.0 / ((H * T) ** 0.5)
    w2 = jax.random.uniform(kw2, (H * T, L), jnp.float32, -lim2, lim2)  # fc.weight.T
    b2 = jax.random.uniform(kb2, (L,), jnp.float32, -lim2, lim2)

    # gumbel1 - gumbel2 ~ Logistic(0, 1)
    noise = jax.random.logistic(kn, (B, L), dtype=jnp.float32)

    # One-time weight precomposition (would be cached in a module, not per call).
    w_comb, b_eff = jax.block_until_ready(precompose_weights(w1, b1, w2, b2))

    block_mask = block_select(x, w_comb, b_eff, noise)
    jax.block_until_ready(block_mask)

    # pure-JAX reference for the original (unfused) two-layer hard forward
    h_ref = jnp.einsum("bte,eh->bth", x, w1,
                       precision=jax.lax.Precision.HIGHEST) + b1
    logits_ref = jnp.dot(h_ref.reshape(B, T * H), w2,
                         precision=jax.lax.Precision.HIGHEST) + b2
    z_ref = logits_ref + noise
    mask_ref = (z_ref > 0.0).astype(jnp.float32)
    ties = jnp.abs(z_ref) < 1e-3   # tolerate float-summation-order knife edges

    assert block_mask.shape == (B, L) and block_mask.dtype == jnp.float32
    assert bool(jnp.all((block_mask == mask_ref) | ties))
    print("KERNEL_OK")
</pallas_src>

<mosaic_0001>
module attributes {stable_mosaic.version = 11 : i64} {
  func.func @block_select_kernel(%arg0: memref<2x256xf32, #tpu.memory_space<vmem>>, %arg1: memref<256x8xf32, #tpu.memory_space<vmem>>, %arg2: memref<1x8xf32, #tpu.memory_space<vmem>>, %arg3: memref<2x8xf32, #tpu.memory_space<vmem>>, %arg4: memref<2x8xf32, #tpu.memory_space<vmem>>) attributes {dimension_semantics = [], scalar_prefetch = 0 : i64, scratch_operands = 0 : i64, tpu.core_type = #tpu.core_type<tc>} {
    %c0 = arith.constant 0 : index
    %c0_0 = arith.constant 0 : index
    %0 = vector.load %arg0[%c0, %c0_0] : memref<2x256xf32, #tpu.memory_space<vmem>>, vector<2x256xf32>
    %c0_1 = arith.constant 0 : index
    %c0_2 = arith.constant 0 : index
    %1 = vector.load %arg1[%c0_1, %c0_2] : memref<256x8xf32, #tpu.memory_space<vmem>>, vector<256x8xf32>
    %cst = arith.constant dense<0.000000e+00> : vector<2x8xf32>
    %2 = tpu.matmul %0, %1, %cst {dimension_numbers = #tpu.dot_dimension_numbers<[1], [0], [0], [1], [0, 0, 1, 1], [], []>} : vector<2x256xf32>, vector<256x8xf32>, vector<2x8xf32> -> vector<2x8xf32>
    %c0_3 = arith.constant 0 : index
    %c0_4 = arith.constant 0 : index
    %3 = vector.load %arg2[%c0_3, %c0_4] : memref<1x8xf32, #tpu.memory_space<vmem>>, vector<1x8xf32>
    %4 = vector.broadcast %3 : vector<1x8xf32> to vector<2x8xf32>
    %5 = arith.addf %2, %4 : vector<2x8xf32>
    %c0_5 = arith.constant 0 : index
    %c0_6 = arith.constant 0 : index
    %6 = vector.load %arg3[%c0_5, %c0_6] : memref<2x8xf32, #tpu.memory_space<vmem>>, vector<2x8xf32>
    %7 = arith.addf %5, %6 : vector<2x8xf32>
    %cst_7 = arith.constant 0.000000e+00 : f32
    %8 = vector.broadcast %cst_7 : f32 to vector<2x8xf32>
    %9 = arith.cmpf ogt, %7, %8 : vector<2x8xf32>
    %10 = arith.extui %9 : vector<2x8xi1> to vector<2x8xi32>
    %11 = arith.sitofp %10 : vector<2x8xi32> to vector<2x8xf32>
    %c0_8 = arith.constant 0 : index
    %c0_9 = arith.constant 0 : index
    %12 = vector.load %arg4[%c0_8, %c0_9] : memref<2x8xf32, #tpu.memory_space<vmem>>, vector<2x8xf32>
    tpu.vector_store %arg4[%c0_8, %c0_9], %11 {strides = array<i32>} : memref<2x8xf32, #tpu.memory_space<vmem>>, vector<2x8xf32>,
    return
  }
}

</mosaic_0001>

<llo_original>
// kernel: tpu_custom_call.1
$region0: #{tpu_custom_call.1}
  #allocation0 [shape = 'u32[]', space=smem, size = 0x4, offset = 0x4, fixed_abs, tag = 'smem constant byte address 0x4 - core index']
  #allocation1 [shape = 'u32[72,128]{1,0:T(1,128)}', space=vmem, size = 0x9000, scoped, tag = 'internal scratch']
  %s0 = inlined_call_operand.vmem [shape: f32[2,256], index: 0, kind: input, shape index: {}]
  %s1 = inlined_call_operand.vmem [shape: f32[256,8], index: 1, kind: input, shape index: {}]
  %s2 = inlined_call_operand.vmem [shape: f32[1,8], index: 2, kind: input, shape index: {}]
  %s3 = inlined_call_operand.vmem [shape: f32[2,8], index: 3, kind: input, shape index: {}]
  %s4 = inlined_call_operand.hbm [shape: f32[2,8], index: 4, kind: output, shape index: {}]
  %s5 = sld [smem:[#allocation0]]
  $region26: #{tpu_custom_call.1} parent=0
    _
  %s7 = ssub.s32 1, %s5
  %s8 = scalar_select 0, %s7, %s5
  $region1: #{tpu_custom_call.1} parent=0
    #allocation2 [shape = 'u8[1024]{0}', space=vmem, size = 0x400, scoped, tag = 'output window, operand 0, single buffered']
    #allocation3 [shape = 's32[1]{0}', space=sflag, size = 0x4, scoped, tag = 'scoped memory for tpu_custom_call.1']
    %9 = vsyncpa [#allocation3], 0
    // Predicated region
    $region2: #{tpu_custom_call.1} parent=1 // pred_check
      _
    $region3: #{tpu_custom_call.1} parent=1 // pred_check_branch
      %11 = sbr.rel (0) target = $region5
    $region4: #{tpu_custom_call.1} parent=1 // pred_region
      _
    $region5: #{tpu_custom_call.1} parent=1 // pred_fallthru
      _
    // Predicated region
    $region6: #{tpu_custom_call.1} parent=1 // pred_check
      _
    $region7: #{tpu_custom_call.1} parent=1 // pred_check_branch
      %13 = sbr.rel (0) target = $region9
    $region8: #{tpu_custom_call.1} parent=1 // pred_region
      _
    $region9: #{tpu_custom_call.1} parent=1 // pred_fallthru
      _
    // Predicated region
    $region10: #{tpu_custom_call.1} parent=1 // pred_check
      _
    $region11: #{tpu_custom_call.1} parent=1 // pred_check_branch
      %15 = sbr.rel (0) target = $region13
    $region12: #{tpu_custom_call.1} parent=1 // pred_region
      _
    $region13: #{tpu_custom_call.1} parent=1 // pred_fallthru
      _
    // Predicated region
    $region14: #{tpu_custom_call.1} parent=1 // pred_check
      _
    $region15: #{tpu_custom_call.1} parent=1 // pred_check_branch
      %17 = sbr.rel (0) target = $region17
    $region16: #{tpu_custom_call.1} parent=1 // pred_region
      _
    $region17: #{tpu_custom_call.1} parent=1 // pred_fallthru
      _
    %v18 = vld [vmem:[%s0] sm:$0xf]
    %v19 = vld [vmem:[%s1] sm:$0xff]
    %v20 = vld [vmem:[%s1 + $0x8] sm:$0xff]
    %v21 = vld [vmem:[%s1 + $0x10] sm:$0xff]
    %v22 = vld [vmem:[%s1 + $0x18] sm:$0xff]
    %v23 = vld [vmem:[%s1 + $0x20] sm:$0xff]
    %v24 = vld [vmem:[%s1 + $0x28] sm:$0xff]
    %v25 = vld [vmem:[%s1 + $0x30] sm:$0xff]
    %v26 = vld [vmem:[%s1 + $0x38] sm:$0xff]
    %v27 = vld [vmem:[%s1 + $0x40] sm:$0xff]
    %v28 = vld [vmem:[%s1 + $0x48] sm:$0xff]
    %v29 = vld [vmem:[%s1 + $0x50] sm:$0xff]
    %v30 = vld [vmem:[%s1 + $0x58] sm:$0xff]
    %v31 = vld [vmem:[%s1 + $0x60] sm:$0xff]
    %v32 = vld [vmem:[%s1 + $0x68] sm:$0xff]
    %v33 = vld [vmem:[%s1 + $0x70] sm:$0xff]
    %v34 = vld [vmem:[%s1 + $0x78] sm:$0xff]
    %v35 = vld [vmem:[%s1 + $0x80] sm:$0xff]
    %v36 = vld [vmem:[%s1 + $0x88] sm:$0xff]
    %v37 = vld [vmem:[%s1 + $0x90] sm:$0xff]
    %v38 = vld [vmem:[%s1 + $0x98] sm:$0xff]
    %v39 = vld [vmem:[%s1 + $0xa0] sm:$0xff]
    %v40 = vld [vmem:[%s1 + $0xa8] sm:$0xff]
    %v41 = vld [vmem:[%s1 + $0xb0] sm:$0xff]
    %v42 = vld [vmem:[%s1 + $0xb8] sm:$0xff]
    %v43 = vld [vmem:[%s1 + $0xc0] sm:$0xff]
    %v44 = vld [vmem:[%s1 + $0xc8] sm:$0xff]
    %v45 = vld [vmem:[%s1 + $0xd0] sm:$0xff]
    %v46 = vld [vmem:[%s1 + $0xd8] sm:$0xff]
    %v47 = vld [vmem:[%s1 + $0xe0] sm:$0xff]
    %v48 = vld [vmem:[%s1 + $0xe8] sm:$0xff]
    %v49 = vld [vmem:[%s1 + $0xf0] sm:$0xff]
    %v50 = vld [vmem:[%s1 + $0xf8] sm:$0xff]
    %v51 = vld [vmem:[%s2] sm:$0x1]
    %v53 = vperm.slane %v51, 0
    %56 = vst [vmem:[#allocation1] ss:$4 sm:$0xff] %v18
    %v57 = vld.sshfl [vmem:[#allocation1] sm:$0xff pattern:$0x73625140]
    %v58 = vld.sshfl [vmem:[#allocation1 + $0x8] sm:$0xff pattern:$0x73625140]
    %61 = vmatpush.msra.mxu0 %v34
    %62 = vmatpush.msra.mxu0 %v33
    %63 = vmatpush.msra.mxu0 %v32
    %64 = vmatpush.msra.mxu0 %v31
    %65 = vmatpush.msra.mxu0 %v30
    %66 = vmatpush.msra.mxu0 %v29
    %67 = vmatpush.msra.mxu0 %v28
    %68 = vmatpush.msra.mxu0 %v27
    %69 = vmatpush.msra.mxu0 %v26
    %70 = vmatpush.msra.mxu0 %v25
    %71 = vmatpush.msra.mxu0 %v24
    %72 = vmatpush.msra.mxu0 %v23
    %73 = vmatpush.msra.mxu0 %v22
    %74 = vmatpush.msra.mxu0 %v21
    %75 = vmatpush.msra.mxu0 %v20
    %76 = vmatpush.msra.mxu0 %v19
    %77 = vmatmul.f32.gmra.mxu0 %v57
    %v78 = vpop.f32.mrf.mxu0
    %v79 = vadd.f32 %v53, %v78
    %80 = vdwg.mxu0
    %81 = vmatpush.msra.mxu0 %v50
    %82 = vmatpush.msra.mxu0 %v49
    %83 = vmatpush.msra.mxu0 %v48
    %84 = vmatpush.msra.mxu0 %v47
    %85 = vmatpush.msra.mxu0 %v46
    %86 = vmatpush.msra.mxu0 %v45
    %87 = vmatpush.msra.mxu0 %v44
    %88 = vmatpush.msra.mxu0 %v43
    %89 = vmatpush.msra.mxu0 %v42
    %90 = vmatpush.msra.mxu0 %v41
    %91 = vmatpush.msra.mxu0 %v40
    %92 = vmatpush.msra.mxu0 %v39
    %93 = vmatpush.msra.mxu0 %v38
    %94 = vmatpush.msra.mxu0 %v37
    %95 = vmatpush.msra.mxu0 %v36
    %96 = vmatpush.msra.mxu0 %v35
    %97 = vmatmul.f32.gmra.mxu0 %v58
    %v98 = vpop.f32.mrf.mxu0
    %v99 = vadd.f32 %v79, %v98
    %100 = vdwg.mxu0
    %v101 = vld [vmem:[%s3] sm:$0x3]
    %v102 = vadd.f32 %v99, %v101
    %vm103 = vcmp.gt.f32.partialorder %v102, 0.0
    %v104 = vsel %vm103, 1, 0
    %v105 = vcvt.s32.f32 %v104
    %vm106 = vcmask 58368
    %107 = vst.msk [vmem:[#allocation2] sm:$0x3] %vm106, %v105
    // Predicated region
    $region18: #{tpu_custom_call.1} parent=1 // pred_check
      _
    $region19: #{tpu_custom_call.1} parent=1 // pred_check_branch
      %109 = sbr.rel (0) target = $region21
    $region20: #{tpu_custom_call.1} parent=1 // pred_region
      %111 = vsyncadd [#allocation3], 0
      %s113 = sshll.u32 [#allocation2], 4
      %s114 = int_to_ptr.vmem [resolvable:$true] %s113
      %s115 = sshll.u32 %s4, 4
      %s116 = int_to_ptr.hbm [resolvable:$true] %s115
      %118 = dma.vmem_to_hbm [thread:$0]  %s114, 32, %s116, [#allocation3]
    $region21: #{tpu_custom_call.1} parent=1 // pred_fallthru
      _
    // Predicated region
    $region22: #{tpu_custom_call.1} parent=1 // pred_check
      _
    $region23: #{tpu_custom_call.1} parent=1 // pred_check_branch
      %120 = sbr.rel (0) target = $region25
    $region24: #{tpu_custom_call.1} parent=1 // pred_region
      %122 = dma.done [#allocation3], 32
    $region25: #{tpu_custom_call.1} parent=1 // pred_fallthru
      _
    %123 = vsyncpa [#allocation3], 1

</llo_original>
